<compile_context>
chip_gen: v7x
topology: tpu7x:2x2x1
jax: 0.10.0
libtpu: 0.0.40
codegen_flags: <defaults>
</compile_context>

<pallas_src>
import functools

import jax
import jax.numpy as jnp
from jax.experimental import pallas as pl
from jax.experimental.pallas import tpu as pltpu


def _dice_partial_kernel(x_ref, lab_ref, out_ref, acc_ref, *, p_total, needs_mask):
    # x_ref:   (1, C, T) logits block (native dtype)
    # lab_ref: (1, 1, T) labels block (native dtype)
    # out_ref: (1, 2, 128) f32 per-batch result (written only at the last t)
    #          row 0: sum of softmax prob at the label channel (intersection)
    #          row 1: one-hot count (labels in [0, C))
    # acc_ref: (2, T) f32 VMEM scratch, lane-dense accumulator
    t = pl.program_id(1)
    nt = pl.num_programs(1)

    @pl.when(t == 0)
    def _():
        acc_ref[...] = jnp.zeros_like(acc_ref)

    x = x_ref[0].astype(jnp.float32)           # (C, T)
    labels = lab_ref[0].astype(jnp.int32)      # (1, T)
    C, T = x.shape

    # numerically stable softmax pieces over the channel (sublane) axis
    m = jnp.max(x, axis=0, keepdims=True)      # (1, T)
    e = jnp.exp(x - m)                         # (C, T)   -- EUP
    s = jnp.sum(e, axis=0, keepdims=True)      # (1, T)

    # exp at the label channel (one-hot select) without materializing p = e/s
    ch = jax.lax.broadcasted_iota(jnp.int32, (C, T), 0)
    num = jnp.sum(jnp.where(ch == labels, e, 0.0), axis=0, keepdims=True)  # (1, T)

    inter_lane = num * pl.reciprocal(s, approx=False)                      # (1, T)
    valid_lane = jnp.logical_and(labels >= 0, labels < C).astype(jnp.float32)

    if needs_mask:
        # ragged spatial tail: lanes past P hold unspecified data -> NaN-safe select
        lane = jax.lax.broadcasted_iota(jnp.int32, (1, T), 1)
        in_bounds = (t * T + lane) < p_total
        inter_lane = jnp.where(in_bounds, inter_lane, 0.0)
        valid_lane = jnp.where(in_bounds, valid_lane, 0.0)

    # single merged RMW on the lane-dense accumulator
    acc_ref[...] += jnp.concatenate([inter_lane, valid_lane], axis=0)      # (2, T)

    @pl.when(t == nt - 1)
    def _():
        # in-kernel lane reduction: one XLU reduce per n, tiny HBM writeback
        sums = jnp.sum(acc_ref[...], axis=1, keepdims=True)                # (2, 1)
        out_ref[0] = jnp.broadcast_to(sums, (2, 128))


def _vmem_capacity_bytes():
    try:
        return int(pltpu.get_tpu_info().vmem_capacity_bytes)
    except Exception:
        return 64 << 20  # conservative (v7x-like) if the query is unavailable


def _choose_tile(P, C, x_itemsize, lab_itemsize, vmem_target):
    """Largest 128-multiple lane tile whose total pipelined footprint fits."""
    if P <= 128:
        return P
    # per-lane-element bytes: double-buffered logits + labels + 8-sublane-padded acc
    per_lane = 2 * C * x_itemsize + 2 * lab_itemsize + 8 * 4
    max_tile = max(128, (vmem_target // per_lane) // 128 * 128)
    p_floor = (P // 128) * 128
    return min(max_tile, p_floor)


def dice_loss(output, target, smooth=1.0, tile=None):
    """output: (N, C, H, W) float logits; target: (N, H, W) integer labels."""
    N, C, H, W = output.shape
    P = H * W

    x = output.reshape(N, C, P)          # native dtype, no wrapper cast
    lab = target.reshape(N, 1, P)        # native dtype, cast in-kernel

    # chip-aware VMEM budgeting
    vmem_cap = _vmem_capacity_bytes()
    if vmem_cap >= (100 << 20):          # v5e / v6e: 128 MiB physical VMEM
        vmem_target, vmem_cap_limit = 28 << 20, 48 << 20
    else:                                # v7x: 64 MiB physical VMEM per TC
        vmem_target, vmem_cap_limit = 20 << 20, 40 << 20

    if tile is None:
        tile = _choose_tile(P, C, x.dtype.itemsize, lab.dtype.itemsize, vmem_target)
    assert tile == P or (tile % 128 == 0 and tile <= P), (
        "tile must be a multiple of 128 (<= P) or equal the full spatial size")

    n_t = pl.cdiv(P, tile)
    needs_mask = (P % tile) != 0

    per_lane = 2 * C * x.dtype.itemsize + 2 * lab.dtype.itemsize + 8 * 4
    vmem_limit = int(min(vmem_cap_limit, max(per_lane * tile + (4 << 20), 16 << 20)))

    kernel = functools.partial(_dice_partial_kernel, p_total=P, needs_mask=needs_mask)

    partials = pl.pallas_call(
        kernel,
        out_shape=jax.ShapeDtypeStruct((N, 2, 128), jnp.float32),
        grid_spec=pltpu.PrefetchScalarGridSpec(
            num_scalar_prefetch=0,
            grid=(N, n_t),
            in_specs=[
                pl.BlockSpec((1, C, tile), lambda n, t: (n, 0, t)),
                pl.BlockSpec((1, 1, tile), lambda n, t: (n, 0, t)),
            ],
            out_specs=pl.BlockSpec((1, 2, 128), lambda n, t: (n, 0, 0)),
            scratch_shapes=[pltpu.VMEM((2, tile), jnp.float32)],
        ),
        compiler_params=pltpu.CompilerParams(
            dimension_semantics=("parallel", "arbitrary"),
            vmem_limit_bytes=vmem_limit),
    )(x, lab)

    intersection = jnp.sum(partials[:, 0, 0])
    target_sum = jnp.sum(partials[:, 1, 0])
    # softmax sums to exactly 1 per pixel, so sum(softmax) == N * H * W
    output_sum = jnp.asarray(N * P, jnp.float32)
    return 1.0 - (2.0 * intersection + smooth) / (output_sum + target_sum + smooth)


def _dice_loss_ref(output, target, smooth=1.0):
    # pure-JAX reference mirroring the PyTorch module
    N, C, H, W = output.shape
    probs = jax.nn.softmax(output.astype(jnp.float32), axis=1)
    onehot = jax.nn.one_hot(target, C, axis=1, dtype=jnp.float32)
    intersection = jnp.sum(probs * onehot)
    return 1.0 - (2.0 * intersection + smooth) / (
        jnp.sum(probs) + jnp.sum(onehot) + smooth)


if __name__ == "__main__":
    key = jax.random.PRNGKey(0)
    k1, k2, k3, k4 = jax.random.split(key, 4)

    # primary check: small, 128-aligned spatial extent
    N, C, H, W = 2, 4, 16, 16
    logits = jax.random.normal(k1, (N, C, H, W), dtype=jnp.float32)
    labels = jax.random.randint(k2, (N, H, W), 0, C, dtype=jnp.int32)

    loss = dice_loss(logits, labels, smooth=1.0)
    loss = jax.block_until_ready(loss)
    ref = _dice_loss_ref(logits, labels, smooth=1.0)
    assert jnp.allclose(loss, ref, atol=1e-5, rtol=1e-5), (loss, ref)

    # secondary check: ragged spatial tail (P=300, tile=256), odd C, N=1
    N2, C2, H2, W2 = 1, 3, 15, 20
    logits2 = jax.random.normal(k3, (N2, C2, H2, W2), dtype=jnp.float32)
    labels2 = jax.random.randint(k4, (N2, H2, W2), 0, C2, dtype=jnp.int32)

    loss2 = dice_loss(logits2, labels2, smooth=1.0)
    loss2 = jax.block_until_ready(loss2)
    ref2 = _dice_loss_ref(logits2, labels2, smooth=1.0)
    assert jnp.allclose(loss2, ref2, atol=1e-5, rtol=1e-5), (loss2, ref2)

    print("KERNEL_OK")
</pallas_src>

<mosaic_0001>
module attributes {stable_mosaic.version = 11 : i64} {
  func.func @_dice_partial_kernel(%arg0: i32, %arg1: i32, %arg2: memref<1x4x256xf32, #tpu.memory_space<vmem>>, %arg3: memref<1x1x256xi32, #tpu.memory_space<vmem>>, %arg4: memref<1x2x128xf32, #tpu.memory_space<vmem>>, %arg5: memref<2x256xf32, #tpu.memory_space<vmem>>) attributes {dimension_semantics = [#tpu.dimension_semantics<parallel>, #tpu.dimension_semantics<arbitrary>], iteration_bounds = array<i64: 2, 1>, scalar_prefetch = 0 : i64, scratch_operands = 1 : i64, tpu.core_type = #tpu.core_type<tc>, window_params = [{transform_indices = @transform_0, window_bounds = array<i64: 1, 4, 256>}, {transform_indices = @transform_1, window_bounds = array<i64: 1, 1, 256>}, {transform_indices = @transform_2, window_bounds = array<i64: 1, 2, 128>}]} {
    %c0_i32 = arith.constant 0 : i32
    %0 = arith.cmpi eq, %arg1, %c0_i32 : i32
    %1 = arith.extui %0 : i1 to i32
    %c0_i32_0 = arith.constant 0 : i32
    %2 = arith.cmpi ne, %1, %c0_i32_0 : i32
    scf.if %2 {
      %cst_16 = arith.constant 0.000000e+00 : f32
      %37 = vector.broadcast %cst_16 : f32 to vector<2x256xf32>
      %c0_17 = arith.constant 0 : index
      %c0_18 = arith.constant 0 : index
      %38 = vector.load %arg5[%c0_17, %c0_18] : memref<2x256xf32, #tpu.memory_space<vmem>>, vector<2x256xf32>
      tpu.vector_store %arg5[%c0_17, %c0_18], %37 {strides = array<i32>} : memref<2x256xf32, #tpu.memory_space<vmem>>, vector<2x256xf32>,
    } else {
    }
    %c0 = arith.constant 0 : index
    %c0_1 = arith.constant 0 : index
    %c0_2 = arith.constant 0 : index
    %3 = vector.load %arg2[%c0, %c0_1, %c0_2] : memref<1x4x256xf32, #tpu.memory_space<vmem>>, vector<1x4x256xf32>
    %4 = vector.shape_cast %3 : vector<1x4x256xf32> to vector<4x256xf32>
    %c0_3 = arith.constant 0 : index
    %c0_4 = arith.constant 0 : index
    %c0_5 = arith.constant 0 : index
    %5 = vector.load %arg3[%c0_3, %c0_4, %c0_5] : memref<1x1x256xi32, #tpu.memory_space<vmem>>, vector<1x1x256xi32>
    %6 = vector.shape_cast %5 : vector<1x1x256xi32> to vector<1x256xi32>
    %cst = arith.constant dense<0xFF800000> : vector<256xf32>
    %7 = vector.multi_reduction <maximumf>, %4, %cst [0] : vector<4x256xf32> to vector<256xf32>
    %8 = vector.shape_cast %7 : vector<256xf32> to vector<1x256xf32>
    %9 = vector.broadcast %8 : vector<1x256xf32> to vector<4x256xf32>
    %10 = arith.subf %4, %9 : vector<4x256xf32>
    %11 = math.exp %10 : vector<4x256xf32>
    %cst_6 = arith.constant dense<0.000000e+00> : vector<256xf32>
    %12 = vector.multi_reduction <add>, %11, %cst_6 [0] : vector<4x256xf32> to vector<256xf32>
    %13 = vector.shape_cast %12 : vector<256xf32> to vector<1x256xf32>
    %14 = tpu.iota {dimensions = array<i32: 0>} : vector<4x256xi32>
    %15 = vector.broadcast %6 : vector<1x256xi32> to vector<4x256xi32>
    %16 = arith.cmpi eq, %14, %15 : vector<4x256xi32>
    %cst_7 = arith.constant 0.000000e+00 : f32
    %17 = vector.broadcast %cst_7 : f32 to vector<4x256xf32>
    %18 = arith.select %16, %11, %17 : vector<4x256xi1>, vector<4x256xf32>
    %cst_8 = arith.constant dense<0.000000e+00> : vector<256xf32>
    %19 = vector.multi_reduction <add>, %18, %cst_8 [0] : vector<4x256xf32> to vector<256xf32>
    %20 = vector.shape_cast %19 : vector<256xf32> to vector<1x256xf32>
    %21 = tpu.reciprocal %13 : vector<1x256xf32> -> vector<1x256xf32>
    %22 = arith.mulf %20, %21 : vector<1x256xf32>
    %c0_i32_9 = arith.constant 0 : i32
    %23 = vector.broadcast %c0_i32_9 : i32 to vector<1x256xi32>
    %24 = arith.cmpi sge, %6, %23 : vector<1x256xi32>
    %c4_i32 = arith.constant 4 : i32
    %25 = vector.broadcast %c4_i32 : i32 to vector<1x256xi32>
    %26 = arith.cmpi slt, %6, %25 : vector<1x256xi32>
    %27 = arith.andi %24, %26 : vector<1x256xi1>
    %28 = arith.extui %27 : vector<1x256xi1> to vector<1x256xi32>
    %29 = arith.sitofp %28 : vector<1x256xi32> to vector<1x256xf32>
    %c0_10 = arith.constant 0 : index
    %c0_11 = arith.constant 0 : index
    %30 = vector.load %arg5[%c0_10, %c0_11] : memref<2x256xf32, #tpu.memory_space<vmem>>, vector<2x256xf32>
    %31 = tpu.concatenate %22, %29 in 0 : vector<1x256xf32>, vector<1x256xf32> -> vector<2x256xf32>
    %32 = arith.addf %30, %31 : vector<2x256xf32>
    %c0_12 = arith.constant 0 : index
    %c0_13 = arith.constant 0 : index
    %33 = vector.load %arg5[%c0_12, %c0_13] : memref<2x256xf32, #tpu.memory_space<vmem>>, vector<2x256xf32>
    tpu.vector_store %arg5[%c0_12, %c0_13], %32 {strides = array<i32>} : memref<2x256xf32, #tpu.memory_space<vmem>>, vector<2x256xf32>,
    %c0_i32_14 = arith.constant 0 : i32
    %34 = arith.cmpi eq, %arg1, %c0_i32_14 : i32
    %35 = arith.extui %34 : i1 to i32
    %c0_i32_15 = arith.constant 0 : i32
    %36 = arith.cmpi ne, %35, %c0_i32_15 : i32
    scf.if %36 {
      %c0_16 = arith.constant 0 : index
      %c0_17 = arith.constant 0 : index
      %37 = vector.load %arg5[%c0_16, %c0_17] : memref<2x256xf32, #tpu.memory_space<vmem>>, vector<2x256xf32>
      %cst_18 = arith.constant dense<0.000000e+00> : vector<2xf32>
      %38 = vector.multi_reduction <add>, %37, %cst_18 [1] : vector<2x256xf32> to vector<2xf32>
      %39 = vector.shape_cast %38 : vector<2xf32> to vector<2x1xf32>
      %40 = vector.shape_cast %39 : vector<2x1xf32> to vector<2x1xf32>
      %41 = vector.broadcast %40 : vector<2x1xf32> to vector<2x128xf32>
      %c0_19 = arith.constant 0 : index
      %c0_20 = arith.constant 0 : index
      %c0_21 = arith.constant 0 : index
      %42 = vector.load %arg4[%c0_19, %c0_20, %c0_21] : memref<1x2x128xf32, #tpu.memory_space<vmem>>, vector<1x2x128xf32>
      %43 = vector.shape_cast %42 : vector<1x2x128xf32> to vector<2x128xf32>
      %44 = vector.shape_cast %41 : vector<2x128xf32> to vector<1x2x128xf32>
      tpu.vector_store %arg4[%c0_19, %c0_20, %c0_21], %44 {strides = array<i32>} : memref<1x2x128xf32, #tpu.memory_space<vmem>>, vector<1x2x128xf32>,
    } else {
    }
    return
  }
  func.func @transform_0(%arg0: i32, %arg1: i32) -> (i32, i32, i32) {
    %c0_i32 = arith.constant 0 : i32
    %c0_i32_0 = arith.constant 0 : i32
    return %arg0, %c0_i32, %arg1 : i32, i32, i32
  }
  func.func @transform_1(%arg0: i32, %arg1: i32) -> (i32, i32, i32) {
    %c0_i32 = arith.constant 0 : i32
    %c0_i32_0 = arith.constant 0 : i32
    return %arg0, %c0_i32, %arg1 : i32, i32, i32
  }
  func.func @transform_2(%arg0: i32, %arg1: i32) -> (i32, i32, i32) {
    %c0_i32 = arith.constant 0 : i32
    %c0_i32_0 = arith.constant 0 : i32
    %c0_i32_1 = arith.constant 0 : i32
    return %arg0, %c0_i32, %c0_i32_0 : i32, i32, i32
  }
}

</mosaic_0001>

<llo_original>
// kernel: tpu_custom_call.1
$region0: #{tpu_custom_call.1}
  #allocation0 [shape = 'u32[]', space=smem, size = 0x4, offset = 0x4, fixed_abs, tag = 'smem constant byte address 0x4 - core index']
  #allocation1 [shape = 'u32[144,128]{1,0:T(1,128)}', space=vmem, size = 0x12000, scoped, tag = 'internal scratch']
  #allocation2 [shape = 'f32[2,256]{1,0:T(2,128)}', space=vmem, size = 0x800, scoped, tag = 'scratch operand']
  %s0 = inlined_call_operand.hbm [shape: f32[2,4,256], index: 0, kind: input, shape index: {}]
  %s1 = inlined_call_operand.hbm [shape: s32[2,1,256], index: 1, kind: input, shape index: {}]
  %s2 = inlined_call_operand.hbm [shape: f32[2,2,128], index: 2, kind: output, shape index: {}]
  %s3 = sld [smem:[#allocation0]]
  $region57: #{tpu_custom_call.1} parent=0
    _
  %s5 = ssub.s32 1, %s3
  %s6 = scalar_select 0, %s5, %s3
  $region1: #{tpu_custom_call.1} parent=0
    #allocation3 [shape = 'u8[8192]{0}', space=vmem, size = 0x2000, scoped, tag = 'input window, operand 0']
    #allocation4 [shape = 's32[2]{0}', space=sflag, size = 0x8, scoped, tag = 'scoped memory for tpu_custom_call.1']
    #allocation5 [shape = 's32[2]{0}', space=sflag, size = 0x8, scoped, tag = 'scoped memory for tpu_custom_call.1']
    #allocation6 [shape = 'u8[2048]{0}', space=vmem, size = 0x800, scoped, tag = 'input window, operand 1']
    #allocation7 [shape = 's32[2]{0}', space=sflag, size = 0x8, scoped, tag = 'scoped memory for tpu_custom_call.1']
    #allocation8 [shape = 'u8[2048]{0}', space=vmem, size = 0x800, scoped, tag = 'output window, operand 0']
    %7 = vsyncpa [#allocation4], 0
    %s8 = scalar_lea.sflag [#allocation4], 1
    %9 = vsyncpa %s8, 0
    %10 = vsyncpa [#allocation7], 0
    %s11 = scalar_lea.sflag [#allocation7], 1
    %12 = vsyncpa %s11, 0
    %13 = vsyncpa [#allocation5], 0
    %s14 = scalar_lea.sflag [#allocation5], 1
    %15 = vsyncpa %s14, 0
    loop: start=0, step=1, limit=4
    $region2: #{tpu_custom_call.1} parent=1 // loop_pre_header
      _
    $region3: #{tpu_custom_call.1} parent=1 // loop_header
      %s17 = sphi 0, %s21
      %p18 = scmp.ge.s32.totalorder %s17, 4
      %s24 = sphi 0, %s36
      %s25 = sphi 0, %s32
      %s26 = sphi 0, %s24
      %s27 = sphi 0, %s25
      %s28 = sphi 0, %s26
      %s29 = sphi 0, %s27
      %s41 = sphi 0, %s43
      %s44 = sphi 0, %s41
      %s45 = sphi 0, %s44
      %s61 = sphi 0, %s45
      %s69 = sphi 0, %s71
      %s72 = sphi 0, %s69
      %s73 = sphi 0, %s72
      %s89 = sphi 0, %s73
      %s95 = sphi 0, %s97
      %s98 = sphi 0, %s95
      %s99 = sphi 0, %s98
      %s115 = sphi 0, %s99
    $region4: #{tpu_custom_call.1} parent=1 // loop_header_branch
      %20 = sbr.rel (%p18) target = $region8
    $region5: #{tpu_custom_call.1} parent=1 // loop_body
      %s22 = ssub.s32 %s17, 1
      %s23 = ssub.s32 %s17, 2
      %s30 = sadd.s32 1, %s25
      %p31 = scmp.ge.s32.totalorder %s30, 1
      %s32 = scalar_select %p31, 0, %s30
      %s33 = sadd.s32 1, %s24
      %s34 = scalar_select %p31, %s33, %s24
      %p35 = scmp.ge.s32.totalorder %s34, 2
      %s36 = scalar_select %p35, 0, %s34
      %s37 = ssub.s32 %s24, %s36
      %s38 = ssub.s32 %s25, %s32
      %s39 = sor.u32 %s37, %s38
      %p40 = scmp.eq.s32.totalorder %s39, 0
      %s42 = sadd.s32 %s41, 1
      %s43 = scalar_select %p40, %s41, %s42
      %p46 = pneg %p40
      %p47 = scmp.eq.s32.totalorder %s17, 1
      %p48 = por %p46, %p47
      %p49 = scmp.ne.s32.totalorder %s41, %s44
      %p50 = scmp.eq.s32.totalorder %s17, 0
      %p51 = por %p49, %p50
      %p52 = scmp.ne.s32.totalorder %s41, %s44
      %p53 = scmp.eq.s32.totalorder %s22, 1
      %p54 = por %p52, %p53
      %p55 = scmp.ne.s32.totalorder %s44, %s45
      %p56 = scmp.eq.s32.totalorder %s22, 0
      %p57 = por %p55, %p56
      %p58 = scmp.ne.s32.totalorder %s44, %s45
      %p59 = scmp.eq.s32.totalorder %s23, 1
      %p60 = por %p58, %p59
      %p62 = scmp.ne.s32.totalorder %s45, %s61
      %p63 = scmp.eq.s32.totalorder %s23, 0
      %p64 = por %p62, %p63
      %s65 = ssub.s32 %s24, %s36
      %s66 = ssub.s32 %s25, %s32
      %s67 = sor.u32 %s65, %s66
      %p68 = scmp.eq.s32.totalorder %s67, 0
      %s70 = sadd.s32 %s69, 1
      %s71 = scalar_select %p68, %s69, %s70
      %p74 = pneg %p68
      %p75 = scmp.eq.s32.totalorder %s17, 1
      %p76 = por %p74, %p75
      %p77 = scmp.ne.s32.totalorder %s69, %s72
      %p78 = scmp.eq.s32.totalorder %s17, 0
      %p79 = por %p77, %p78
      %p80 = scmp.ne.s32.totalorder %s69, %s72
      %p81 = scmp.eq.s32.totalorder %s22, 1
      %p82 = por %p80, %p81
      %p83 = scmp.ne.s32.totalorder %s72, %s73
      %p84 = scmp.eq.s32.totalorder %s22, 0
      %p85 = por %p83, %p84
      %p86 = scmp.ne.s32.totalorder %s72, %s73
      %p87 = scmp.eq.s32.totalorder %s23, 1
      %p88 = por %p86, %p87
      %p90 = scmp.ne.s32.totalorder %s73, %s89
      %p91 = scmp.eq.s32.totalorder %s23, 0
      %p92 = por %p90, %p91
      %s93 = ssub.s32 %s24, %s36
      %p94 = scmp.eq.s32.totalorder %s93, 0
      %s96 = sadd.s32 %s95, 1
      %s97 = scalar_select %p94, %s95, %s96
      %p100 = pneg %p94
      %p101 = scmp.eq.s32.totalorder %s17, 1
      %p102 = por %p100, %p101
      %p103 = scmp.ne.s32.totalorder %s95, %s98
      %p104 = scmp.eq.s32.totalorder %s17, 0
      %p105 = por %p103, %p104
      %p106 = scmp.ne.s32.totalorder %s95, %s98
      %p107 = scmp.eq.s32.totalorder %s22, 1
      %p108 = por %p106, %p107
      %p109 = scmp.ne.s32.totalorder %s98, %s99
      %p110 = scmp.eq.s32.totalorder %s22, 0
      %p111 = por %p109, %p110
      %p112 = scmp.ne.s32.totalorder %s98, %s99
      %p113 = scmp.eq.s32.totalorder %s23, 1
      %p114 = por %p112, %p113
      %p116 = scmp.ne.s32.totalorder %s99, %s115
      %p117 = scmp.eq.s32.totalorder %s23, 0
      %p118 = por %p116, %p117
      %p119 = scmp.le.s32.totalorder 1, %s17
      %p120 = scmp.lt.s32.totalorder %s17, 3
      %p121 = pnand %p119, %p120
      %p122 = pneg %p121
      // Predicated region
      $region9: #{tpu_custom_call.1} parent=5 // pred_check
        _
      $region10: #{tpu_custom_call.1} parent=5 // pred_check_branch
        %124 = sbr.rel (%p121) target = $region12
      $region11: #{tpu_custom_call.1} parent=5 // pred_region
        %s125 = ssub.s32 %s17, 1
      $region12: #{tpu_custom_call.1} parent=5 // pred_fallthru
        _
      %p126 = scmp.lt.s32.totalorder %s17, 2
      // Predicated region
      $region13: #{tpu_custom_call.1} parent=5 // pred_check
        %p127 = pneg %p126
      $region14: #{tpu_custom_call.1} parent=5 // pred_check_branch
        %129 = sbr.rel (%p127) target = $region16
      $region15: #{tpu_custom_call.1} parent=5 // pred_region
        // Predicated region
        $region17: #{tpu_custom_call.1} parent=15 // pred_check
          %p130 = pneg %p51
        $region18: #{tpu_custom_call.1} parent=15 // pred_check_branch
          %132 = sbr.rel (%p130) target = $region20
        $region19: #{tpu_custom_call.1} parent=15 // pred_region
          %s133 = sand.u32 %s41, 1
          %s134 = scalar_lea.sflag [#allocation4], %s133
          %s135 = sand.u32 %s41, 1
          %s136 = smul.addr %s135, 8
          %s137 = scalar_lea.vmem [#allocation3], %s136
          %s138 = smul.u32 2, %s25
          %s140 = ssub.s32 128, 128
          %141 = vsyncadd %s134, %s140
          %s142 = smul.addr %s24, 2
          %s143 = sadd.s32 %s138, %s142
          %s144 = smul.addr %s143, 64
          %s145 = scalar_lea.hbm %s0, %s144
          %s147 = sshll.u32 %s137, 4
          %s148 = int_to_ptr.vmem [resolvable:$true] %s147
          %150 = dma.hbm_to_vmem [thread:$0]  %s145, 128, %s148, %s134
        $region20: #{tpu_custom_call.1} parent=15 // pred_fallthru
          _
        // Predicated region
        $region21: #{tpu_custom_call.1} parent=15 // pred_check
          %p151 = pneg %p79
        $region22: #{tpu_custom_call.1} parent=15 // pred_check_branch
          %153 = sbr.rel (%p151) target = $region24
        $region23: #{tpu_custom_call.1} parent=15 // pred_region
          %s154 = sand.u32 %s69, 1
          %s155 = scalar_lea.sflag [#allocation7], %s154
          %s156 = sand.u32 %s69, 1
          %s157 = smul.addr %s156, 2
          %s158 = scalar_lea.vmem [#allocation6], %s157
          %s159 = smul.u32 2, %s25
          %s161 = ssub.s32 32, 32
          %162 = vsyncadd %s155, %s161
          %s163 = smul.addr %s24, 2
          %s164 = sadd.s32 %s159, %s163
          %s165 = smul.addr %s164, 16
          %s166 = scalar_lea.hbm %s1, %s165
          %s168 = sshll.u32 %s158, 4
          %s169 = int_to_ptr.vmem [resolvable:$true] %s168
          %171 = dma.hbm_to_vmem [thread:$0]  %s166, 32, %s169, %s155
        $region24: #{tpu_custom_call.1} parent=15 // pred_fallthru
          _
      $region16: #{tpu_custom_call.1} parent=5 // pred_fallthru
        _
      %p172 = scmp.le.s32.totalorder 1, %s17
      %p173 = scmp.lt.s32.totalorder %s17, 3
      %p174 = pnand %p172, %p173
      %p175 = pneg %p174
      // Predicated region
      $region25: #{tpu_custom_call.1} parent=5 // pred_check
        _
      $region26: #{tpu_custom_call.1} parent=5 // pred_check_branch
        %177 = sbr.rel (%p174) target = $region28
      $region27: #{tpu_custom_call.1} parent=5 // pred_region
        %s178 = ssub.s32 %s17, 1
        %s179 = sand.u32 %s44, 1
        %s180 = scalar_lea.sflag [#allocation4], %s179
        %s181 = sand.u32 %s44, 1
        %s182 = smul.addr %s181, 8
        %s183 = scalar_lea.vmem [#allocation3], %s182
        // Predicated region
        $region29: #{tpu_custom_call.1} parent=27 // pred_check
          %p184 = pneg %p57
        $region30: #{tpu_custom_call.1} parent=27 // pred_check_branch
          %186 = sbr.rel (%p184) target = $region32
        $region31: #{tpu_custom_call.1} parent=27 // pred_region
          %187 = dma.done %s180, 128
        $region32: #{tpu_custom_call.1} parent=27 // pred_fallthru
          _
        %s188 = sand.u32 %s72, 1
        %s189 = scalar_lea.sflag [#allocation7], %s188
        %s190 = sand.u32 %s72, 1
        %s191 = smul.addr %s190, 2
        %s192 = scalar_lea.vmem [#allocation6], %s191
        // Predicated region
        $region33: #{tpu_custom_call.1} parent=27 // pred_check
          %p193 = pneg %p85
        $region34: #{tpu_custom_call.1} parent=27 // pred_check_branch
          %195 = sbr.rel (%p193) target = $region36
        $region35: #{tpu_custom_call.1} parent=27 // pred_region
          %196 = dma.done %s189, 32
        $region36: #{tpu_custom_call.1} parent=27 // pred_fallthru
          _
        %s197 = sand.u32 %s44, 1
        %s198 = scalar_lea.sflag [#allocation4], %s197
        %s199 = sand.u32 %s44, 1
        %s200 = smul.addr %s199, 8
        %s201 = scalar_lea.vmem [#allocation3], %s200
        %p202 = pneg %p57
        %p203 = pneg %p54
        %s204 = sand.u32 %s72, 1
        %s205 = scalar_lea.sflag [#allocation7], %s204
        %s206 = sand.u32 %s72, 1
        %s207 = smul.addr %s206, 2
        %s208 = scalar_lea.vmem [#allocation6], %s207
        %p209 = pneg %p85
        %p210 = pneg %p82
        %p211 = pneg %p111
        %p212 = pneg %p108
        %s213 = sand.u32 %s98, 1
        %s214 = scalar_lea.sflag [#allocation5], %s213
        %s215 = sand.u32 %s98, 1
        %s216 = smul.addr %s215, 2
        %s217 = scalar_lea.vmem [#allocation8], %s216
        %s218 = smul.u32 2, %s27
        %s219 = smul.u32 2, %s27
        %p220 = scmp.eq.s32.totalorder %s27, 0
        // Predicated region
        $region37: #{tpu_custom_call.1} parent=27 // pred_check
          %p221 = pneg %p220
        $region38: #{tpu_custom_call.1} parent=27 // pred_check_branch
          %223 = sbr.rel (%p221) target = $region40
        $region39: #{tpu_custom_call.1} parent=27 // pred_region
          %224 = vst [vmem:[#allocation2] sm:$0xf] 0.0
        $region40: #{tpu_custom_call.1} parent=27 // pred_fallthru
          _
        %v225 = vld [vmem:[%s183] sm:$0xff]
        %v226 = vld [vmem:[%s192] sm:$0x3]
        %v228 = vcombine.high %v225, %v225
        %vm230 = vcmask 1043456
        %v231 = vsel %vm230, %v225, -inf
        %v232 = vrot.slane %v231, 4
        %v233 = vmax.f32 %v231, %v232
        %v234 = vrot.slane %v233, 2
        %v235 = vmax.f32 %v233, %v234
        %v236 = vrot.slane %v235, 1
        %v237 = vmax.f32 %v235, %v236
        %v238 = vsel %vm230, %v228, -inf
        %v239 = vrot.slane %v238, 4
        %v240 = vmax.f32 %v238, %v239
        %v241 = vrot.slane %v240, 2
        %v242 = vmax.f32 %v240, %v241
        %v243 = vrot.slane %v242, 1
        %v244 = vmax.f32 %v242, %v243
        %v247 = vcombine.low %v237, %v244
        %v249 = vsub.f32 %v225, %v247
        %v250 = vmul.f32 %v249, 1.442695
        %v251 = vpow.pop %v250
        %v253 = vcombine.high %v251, %v251
        %v255 = vsel %vm230, %v251, 0.0
        %v256 = vrot.slane %v255, 4
        %v257 = vadd.f32 %v255, %v256
        %v258 = vrot.slane %v257, 2
        %v259 = vadd.f32 %v257, %v258
        %v260 = vrot.slane %v259, 1
        %v261 = vadd.f32 %v259, %v260
        %v262 = vsel %vm230, %v253, 0.0
        %v263 = vrot.slane %v262, 4
        %v264 = vadd.f32 %v262, %v263
        %v265 = vrot.slane %v264, 2
        %v266 = vadd.f32 %v264, %v265
        %v267 = vrot.slane %v266, 1
        %v268 = vadd.f32 %v266, %v267
        %v269 = vlaneseq
        %v270 = vshrl.u32 %v269, 7
        %v271 = vlaneseq
        %v272 = vshrl.u32 %v271, 7
        %v273 = vsub.s32 0, %v272
        %v274 = vrot.slane %v226, %v273
        %v275 = vlaneseq
        %v276 = vshrl.u32 %v275, 7
        %v277 = vsub.s32 1, %v276
        %v278 = vrot.slane %v226, %v277
        %vm279 = vcmp.eq.s32.totalorder %v270, %v274
        %vm280 = vcmp.eq.s32.totalorder %v270, %v278
        %v281 = vsel %vm279, %v251, 0.0
        %v282 = vsel %vm280, %v253, 0.0
        %v283 = vsel %vm230, %v281, 0.0
        %v284 = vrot.slane %v283, 4
        %v285 = vadd.f32 %v283, %v284
        %v286 = vrot.slane %v285, 2
        %v287 = vadd.f32 %v285, %v286
        %v288 = vrot.slane %v287, 1
        %v289 = vadd.f32 %v287, %v288
        %v290 = vsel %vm230, %v282, 0.0
        %v291 = vrot.slane %v290, 4
        %v292 = vadd.f32 %v290, %v291
        %v293 = vrot.slane %v292, 2
        %v294 = vadd.f32 %v292, %v293
        %v295 = vrot.slane %v294, 1
        %v296 = vadd.f32 %v294, %v295
        %v297 = vrcp.pop %v261
        %v298 = vrcp.pop %v268
        %v299 = vmul.f32 %v289, %v297
        %v300 = vmul.f32 %v296, %v298
        %vm301 = vcmp.ge.s32.totalorder %v226, 0
        %vm302 = vcmp.lt.s32.totalorder %v226, 4
        %vm303 = vmand %vm301, %vm302
        %v304 = vsel %vm303, 1, 0
        %v305 = vcvt.s32.f32 %v304
        %v306 = vld [vmem:[#allocation2] sm:$0xf]
        %v308 = vlaneseq
        %v309 = vshrl.u32 %v308, 7
        %v310 = vsub.s32 0, %v309
        %v311 = vrot.slane %v305, %v310
        %v312 = vlaneseq
        %v313 = vshrl.u32 %v312, 7
        %v314 = vsub.s32 1, %v313
        %v315 = vrot.slane %v305, %v314
        %vm318 = vcmask 1040384
        %v319 = vsel %vm318, %v299, %v311
        %v320 = vsel %vm318, %v300, %v315
        %v323 = vcombine.low %v319, %v320
        %v325 = vunpack.c.l.s4 1983009808
        %v326 = vunpack.c.0.s8 %v325
        %v327 = vlaneseq
        %v328 = vshrl.u32 %v327, 7
        %v329 = vsub.s32 %v326, %v328
        %v330 = vrot.slane %v323, %v329
        %v332 = vadd.f32 %v306, %v330
        %333 = vst [vmem:[#allocation2] sm:$0xf] %v332
        // Predicated region
        $region41: #{tpu_custom_call.1} parent=27 // pred_check
          %p334 = pneg %p220
        $region42: #{tpu_custom_call.1} parent=27 // pred_check_branch
          %336 = sbr.rel (%p334) target = $region44
        $region43: #{tpu_custom_call.1} parent=27 // pred_region
          %v337 = vld [vmem:[#allocation2] sm:$0xf]
          %v340 = vunpack.c.l.s4 1983009808
          %v341 = vunpack.c.0.s8 %v340
          %v342 = vlaneseq
          %v343 = vshrl.u32 %v342, 7
          %v344 = vsub.s32 %v341, %v343
          %v345 = vrot.slane %v337, %v344
          %v346 = vcombine.high %v345, %v345
          %vm349 = vcmask 1041408
          %v350 = vsel %vm349, %v345, 0.0
          %v351 = vsel %vm349, %v346, 0.0
          %v352 = vadd.f32 %v350, %v351
          %353 = vadd.xlane.f32.xlu0 %v352
          %v354 = vpop.xlane.xlu0 %353
          %355 = vst [vmem:[%s217] sm:$0x3] %v354
        $region44: #{tpu_custom_call.1} parent=27 // pred_fallthru
          _
        %s356 = sand.u32 %s98, 1
        %s357 = scalar_lea.sflag [#allocation5], %s356
        %s358 = sand.u32 %s98, 1
        %s359 = smul.addr %s358, 2
        %s360 = scalar_lea.vmem [#allocation8], %s359
        // Predicated region
        $region45: #{tpu_custom_call.1} parent=27 // pred_check
          %p361 = pneg %p108
        $region46: #{tpu_custom_call.1} parent=27 // pred_check_branch
          %363 = sbr.rel (%p361) target = $region48
        $region47: #{tpu_custom_call.1} parent=27 // pred_region
          %s365 = ssub.s32 32, 32
          %366 = vsyncadd %s357, %s365
          %s367 = smul.addr %s26, 32
          %s368 = scalar_lea.hbm %s2, %s367
          %s370 = sshll.u32 %s360, 4
          %s371 = int_to_ptr.vmem [resolvable:$true] %s370
          %373 = dma.vmem_to_hbm [thread:$0]  %s371, 32, %s368, %s357
        $region48: #{tpu_custom_call.1} parent=27 // pred_fallthru
          _
      $region28: #{tpu_custom_call.1} parent=5 // pred_fallthru
        _
      %p374 = scmp.le.s32.totalorder 2, %s17
      // Predicated region
      $region49: #{tpu_custom_call.1} parent=5 // pred_check
        %p375 = pneg %p374
      $region50: #{tpu_custom_call.1} parent=5 // pred_check_branch
        %377 = sbr.rel (%p375) target = $region52
      $region51: #{tpu_custom_call.1} parent=5 // pred_region
        %s378 = ssub.s32 %s17, 2
        // Predicated region
        $region53: #{tpu_custom_call.1} parent=51 // pred_check
          %p379 = pneg %p114
        $region54: #{tpu_custom_call.1} parent=51 // pred_check_branch
          %381 = sbr.rel (%p379) target = $region56
        $region55: #{tpu_custom_call.1} parent=51 // pred_region
          %s382 = sand.u32 %s99, 1
          %s383 = scalar_lea.sflag [#allocation5], %s382
          %s384 = sand.u32 %s99, 1
          %s385 = smul.addr %s384, 2
          %s386 = scalar_lea.vmem [#allocation8], %s385
          %387 = dma.done %s383, 32
        $region56: #{tpu_custom_call.1} parent=51 // pred_fallthru
          _
      $region52: #{tpu_custom_call.1} parent=5 // pred_fallthru
        _
    $region6: #{tpu_custom_call.1} parent=1 // loop_footer
      %s21 = sadd.s32 1, %s17
    $region7: #{tpu_custom_call.1} parent=1 // loop_footer_branch
      %16 = sbr.rel target = $region3
    $region8: #{tpu_custom_call.1} parent=1 // loop_exit
      _
    %388 = vsyncpa [#allocation4], 1
    %s389 = scalar_lea.sflag [#allocation4], 1
    %390 = vsyncpa %s389, 1
    %391 = vsyncpa [#allocation7], 1
    %s392 = scalar_lea.sflag [#allocation7], 1
    %393 = vsyncpa %s392, 1
    %394 = vsyncpa [#allocation5], 1
    %s395 = scalar_lea.sflag [#allocation5], 1
    %396 = vsyncpa %s395, 1

</llo_original>
